<compile_context>
chip_gen: v7x
topology: tpu7x:2x2x1
jax: 0.10.0
libtpu: 0.0.40
codegen_flags: <defaults>
</compile_context>

<pallas_src>
import functools

import jax
import jax.numpy as jnp
import numpy as np
from jax.experimental import pallas as pl
from jax.experimental.pallas import tpu as pltpu


def _combo_kernel(logits_ref, labels_ref, ce_ref, inter_ref, psum_ref, osum_ref, *,
                  tile_rows, hw_true, needs_mask):
    """Grid = (N, pixel_tiles).  Kernel views:
         logits_ref : (C, tile_rows, 128)   (any float dtype; upcast per-class in VMEM)
         labels_ref : (tile_rows, 128) int32
         ce_ref     : (8, 128)   f32   per-image CE partial   (resident accumulator)
         inter_ref  : (C, 8, 128) f32  per-image dice partials (resident accumulators)
         psum_ref   : (C, 8, 128) f32
         osum_ref   : (C, 8, 128) f32
    """
    t = pl.program_id(1)

    @pl.when(t == 0)
    def _init():
        ce_ref[...] = jnp.zeros_like(ce_ref)
        inter_ref[...] = jnp.zeros_like(inter_ref)
        psum_ref[...] = jnp.zeros_like(psum_ref)
        osum_ref[...] = jnp.zeros_like(osum_ref)

    C = logits_ref.shape[0]
    labels = labels_ref[...]                                   # (tile_rows, 128) int32

    if needs_mask:
        row = jax.lax.broadcasted_iota(jnp.int32, (tile_rows, 128), 0)
        lane = jax.lax.broadcasted_iota(jnp.int32, (tile_rows, 128), 1)
        valid = ((t * tile_rows + row) * 128 + lane) < hw_true   # (tile_rows, 128) bool
    else:
        valid = None

    # Per-class f32 slabs (dense vregs); jnp.where masking so garbage lanes in ragged
    # blocks can never contaminate the sums (select, not multiply).
    xs = []
    for c in range(C):
        xc = logits_ref[c].astype(jnp.float32)                  # (tile_rows, 128)
        if valid is not None:
            xc = jnp.where(valid, xc, 0.0)
        xs.append(xc)

    # Stable log-softmax across classes: pure elementwise ops across the C slabs.
    m = xs[0]
    for c in range(1, C):
        m = jnp.maximum(m, xs[c])
    ezs = [jnp.exp(x - m) for x in xs]
    sez = ezs[0]
    for c in range(1, C):
        sez = sez + ezs[c]
    lse = jnp.log(sez) + m

    inv = pl.reciprocal(sez, approx=True)                       # EUP slot
    inv = inv * (2.0 - sez * inv)                               # one Newton step
    if valid is not None:
        inv = jnp.where(valid, inv, 0.0)                        # zeroes probs on padded lanes

    def rowsum(x):
        # (tile_rows,128) -> (8,128): pure vreg adds (no cross-lane/sublane reduce per step).
        return jnp.sum(x.reshape(tile_rows // 8, 8, 128), axis=0)

    picked = jnp.zeros_like(m)
    for c in range(C):
        sel = labels == c
        if valid is not None:
            sel = jnp.logical_and(sel, valid)
        picked = picked + jnp.where(sel, xs[c], 0.0)            # logits[label]
        probs_c = ezs[c] * inv                                  # softmax prob, masked lanes = 0
        inter_ref[c] += rowsum(jnp.where(sel, probs_c, 0.0))
        psum_ref[c] += rowsum(probs_c)
        osum_ref[c] += rowsum(sel.astype(jnp.float32))

    ce_term = lse - picked
    if valid is not None:
        ce_term = jnp.where(valid, ce_term, 0.0)
    ce_ref[...] += rowsum(ce_term)


def combo_ce_dice_loss(outputs, labels, *, bce_weight=1.0, dice_weight=1.0, eps=1e-6,
                       vmem_budget_bytes=16 * 1024 * 1024):
    """outputs: [N, C, H, W] logits (f32 or bf16), labels: [N, H, W] int class ids."""
    N, C, H, W = outputs.shape
    HW = H * W
    itemsize = jnp.dtype(outputs.dtype).itemsize
    mult = 8 if itemsize >= 4 else 16          # sublane granularity (f32 vs packed bf16)

    # Lane-pad only: round the pixel axis to a multiple of 128 (and a small minimum) so
    # the contiguous reshape to [..., R, 128] is valid.  No padding to the tile size —
    # ragged last tiles are masked inside the kernel.
    HWp = ((HW + 127) // 128) * 128
    HWp = max(HWp, mult * 128)
    logits = outputs.reshape(N, C, HW)
    labels2 = labels.reshape(N, HW).astype(jnp.int32)
    if HWp != HW:
        logits = jnp.pad(logits, ((0, 0), (0, 0), (0, HWp - HW)))
        labels2 = jnp.pad(labels2, ((0, 0), (0, HWp - HW)))
    R = HWp // 128
    logits4 = logits.reshape(N, C, R, 128)
    labels3 = labels2.reshape(N, R, 128)

    # Pixel tile (rows of 128) from a VMEM budget:
    #   double-buffered logits+labels blocks  +  ~(2C+8) live f32 (rows,128) temporaries.
    bytes_per_row = 2 * 128 * (C * itemsize + 4) + (2 * C + 8) * 128 * 4
    budget_rows = max(mult, (int(vmem_budget_bytes) // bytes_per_row) // mult * mult)
    tile_rows = min(budget_rows, (R // mult) * mult)
    n_tiles = (R + tile_rows - 1) // tile_rows
    needs_mask = (n_tiles * tile_rows * 128) != HW

    kernel = functools.partial(
        _combo_kernel,
        tile_rows=int(tile_rows),
        hw_true=int(HW),
        needs_mask=bool(needs_mask),
    )

    ce_p, inter_p, psum_p, osum_p = pl.pallas_call(
        kernel,
        out_shape=(
            jax.ShapeDtypeStruct((N, 8, 128), jnp.float32),          # CE partial / image
            jax.ShapeDtypeStruct((N, C, 8, 128), jnp.float32),       # dice intersection
            jax.ShapeDtypeStruct((N, C, 8, 128), jnp.float32),       # prob sums
            jax.ShapeDtypeStruct((N, C, 8, 128), jnp.float32),       # onehot sums
        ),
        grid_spec=pltpu.PrefetchScalarGridSpec(
            num_scalar_prefetch=0,
            grid=(N, int(n_tiles)),
            in_specs=[
                pl.BlockSpec((None, C, tile_rows, 128), lambda n, t: (n, 0, t, 0)),
                pl.BlockSpec((None, tile_rows, 128), lambda n, t: (n, t, 0)),
            ],
            out_specs=[
                pl.BlockSpec((None, 8, 128), lambda n, t: (n, 0, 0)),
                pl.BlockSpec((None, C, 8, 128), lambda n, t: (n, 0, 0, 0)),
                pl.BlockSpec((None, C, 8, 128), lambda n, t: (n, 0, 0, 0)),
                pl.BlockSpec((None, C, 8, 128), lambda n, t: (n, 0, 0, 0)),
            ],
        ),
        compiler_params=pltpu.CompilerParams(
            # per-image outputs -> batch axis is parallel (v7x megacore); the pixel-tile
            # axis carries the resident output accumulators -> arbitrary.
            dimension_semantics=("parallel", "arbitrary"),
            vmem_limit_bytes=40 * 1024 * 1024,
        ),
    )(logits4, labels3)

    # Tiny wrapper-side combine of the per-image partials.
    ce = jnp.sum(ce_p) / float(N * HW)
    inter = jnp.sum(inter_p, axis=(0, 2, 3))
    psum = jnp.sum(psum_p, axis=(0, 2, 3))
    osum = jnp.sum(osum_p, axis=(0, 2, 3))
    dice_score = (2.0 * inter + eps) / (psum + osum + eps)
    dice_loss = 1.0 - jnp.mean(dice_score)
    return bce_weight * ce + dice_weight * dice_loss


def _reference_loss(outputs, labels, bce_weight=1.0, dice_weight=1.0, eps=1e-6):
    N, C, H, W = outputs.shape
    logits = jnp.transpose(outputs, (0, 2, 3, 1)).reshape(-1, C).astype(jnp.float32)
    lbl = labels.reshape(-1).astype(jnp.int32)
    logp = jax.nn.log_softmax(logits, axis=-1)
    ce = -jnp.mean(jnp.take_along_axis(logp, lbl[:, None], axis=-1))
    probs = jax.nn.softmax(logits, axis=-1)
    onehot = jax.nn.one_hot(lbl, C, dtype=jnp.float32)
    inter = jnp.sum(probs * onehot, axis=0)
    card = jnp.sum(probs, axis=0) + jnp.sum(onehot, axis=0)
    dice = 1.0 - jnp.mean((2.0 * inter + eps) / (card + eps))
    return bce_weight * ce + dice_weight * dice


if __name__ == "__main__":
    key = jax.random.PRNGKey(0)
    k1, k2, k3, k4, k5, k6 = jax.random.split(key, 6)

    # Case 1: canonical small shape (HW=256 -> lane-padded to 1024; masked path).
    N, C, H, W = 2, 4, 16, 16
    outputs = jax.random.normal(k1, (N, C, H, W), dtype=jnp.float32)
    labels = jax.random.randint(k2, (N, H, W), 0, C, dtype=jnp.int32)
    loss = jax.block_until_ready(combo_ce_dice_loss(outputs, labels))
    ref = _reference_loss(outputs, labels)
    np.testing.assert_allclose(np.asarray(loss), np.asarray(ref), rtol=1e-3, atol=1e-4)

    # Case 2: ragged spatial size (HW not a multiple of 128) -> lane padding + mask.
    N2, C2, H2, W2 = 2, 4, 16, 15
    outputs2 = jax.random.normal(k3, (N2, C2, H2, W2), dtype=jnp.float32)
    labels2 = jax.random.randint(k4, (N2, H2, W2), 0, C2, dtype=jnp.int32)
    loss2 = jax.block_until_ready(combo_ce_dice_loss(outputs2, labels2))
    ref2 = _reference_loss(outputs2, labels2)
    np.testing.assert_allclose(np.asarray(loss2), np.asarray(ref2), rtol=1e-3, atol=1e-4)

    # Case 3: multi-tile accumulation across the pixel-tile axis (tiny VMEM budget forces
    # tile_rows=8 -> 4 tiles per image), fully-valid no-mask fast path.
    N3, C3, H3, W3 = 2, 4, 64, 64
    outputs3 = jax.random.normal(k5, (N3, C3, H3, W3), dtype=jnp.float32)
    labels3 = jax.random.randint(k6, (N3, H3, W3), 0, C3, dtype=jnp.int32)
    loss3 = jax.block_until_ready(
        combo_ce_dice_loss(outputs3, labels3, vmem_budget_bytes=64 * 1024))
    ref3 = _reference_loss(outputs3, labels3)
    np.testing.assert_allclose(np.asarray(loss3), np.asarray(ref3), rtol=1e-3, atol=1e-4)

    print("KERNEL_OK")
</pallas_src>

<mosaic_0001>
module attributes {stable_mosaic.version = 11 : i64} {
  func.func @_combo_kernel(%arg0: i32, %arg1: i32, %arg2: memref<1x4x8x128xf32, #tpu.memory_space<vmem>>, %arg3: memref<1x8x128xi32, #tpu.memory_space<vmem>>, %arg4: memref<1x8x128xf32, #tpu.memory_space<vmem>>, %arg5: memref<1x4x8x128xf32, #tpu.memory_space<vmem>>, %arg6: memref<1x4x8x128xf32, #tpu.memory_space<vmem>>, %arg7: memref<1x4x8x128xf32, #tpu.memory_space<vmem>>) attributes {dimension_semantics = [#tpu.dimension_semantics<parallel>, #tpu.dimension_semantics<arbitrary>], iteration_bounds = array<i64: 2, 1>, scalar_prefetch = 0 : i64, scratch_operands = 0 : i64, tpu.core_type = #tpu.core_type<tc>, window_params = [{transform_indices = @transform_0, window_bounds = array<i64: 1, 4, 8, 128>}, {transform_indices = @transform_1, window_bounds = array<i64: 1, 8, 128>}, {transform_indices = @transform_2, window_bounds = array<i64: 1, 8, 128>}, {transform_indices = @transform_3, window_bounds = array<i64: 1, 4, 8, 128>}, {transform_indices = @transform_4, window_bounds = array<i64: 1, 4, 8, 128>}, {transform_indices = @transform_5, window_bounds = array<i64: 1, 4, 8, 128>}]} {
    %c0_i32 = arith.constant 0 : i32
    %0 = arith.cmpi eq, %arg1, %c0_i32 : i32
    %1 = arith.extui %0 : i1 to i32
    %c0_i32_0 = arith.constant 0 : i32
    %2 = arith.cmpi ne, %1, %c0_i32_0 : i32
    scf.if %2 {
      %cst_147 = arith.constant 0.000000e+00 : f32
      %206 = vector.broadcast %cst_147 : f32 to vector<8x128xf32>
      %c0_148 = arith.constant 0 : index
      %c0_149 = arith.constant 0 : index
      %c0_150 = arith.constant 0 : index
      %207 = vector.load %arg4[%c0_148, %c0_149, %c0_150] : memref<1x8x128xf32, #tpu.memory_space<vmem>>, vector<1x8x128xf32>
      %208 = vector.shape_cast %207 : vector<1x8x128xf32> to vector<8x128xf32>
      %209 = vector.shape_cast %206 : vector<8x128xf32> to vector<1x8x128xf32>
      tpu.vector_store %arg4[%c0_148, %c0_149, %c0_150], %209 {strides = array<i32>} : memref<1x8x128xf32, #tpu.memory_space<vmem>>, vector<1x8x128xf32>,
      %cst_151 = arith.constant 0.000000e+00 : f32
      %210 = vector.broadcast %cst_151 : f32 to vector<4x8x128xf32>
      %c0_152 = arith.constant 0 : index
      %c0_153 = arith.constant 0 : index
      %c0_154 = arith.constant 0 : index
      %c0_155 = arith.constant 0 : index
      %211 = vector.load %arg5[%c0_152, %c0_153, %c0_154, %c0_155] : memref<1x4x8x128xf32, #tpu.memory_space<vmem>>, vector<1x4x8x128xf32>
      %212 = vector.shape_cast %211 : vector<1x4x8x128xf32> to vector<4x8x128xf32>
      %213 = vector.shape_cast %210 : vector<4x8x128xf32> to vector<1x4x8x128xf32>
      tpu.vector_store %arg5[%c0_152, %c0_153, %c0_154, %c0_155], %213 {strides = array<i32>} : memref<1x4x8x128xf32, #tpu.memory_space<vmem>>, vector<1x4x8x128xf32>,
      %cst_156 = arith.constant 0.000000e+00 : f32
      %214 = vector.broadcast %cst_156 : f32 to vector<4x8x128xf32>
      %c0_157 = arith.constant 0 : index
      %c0_158 = arith.constant 0 : index
      %c0_159 = arith.constant 0 : index
      %c0_160 = arith.constant 0 : index
      %215 = vector.load %arg6[%c0_157, %c0_158, %c0_159, %c0_160] : memref<1x4x8x128xf32, #tpu.memory_space<vmem>>, vector<1x4x8x128xf32>
      %216 = vector.shape_cast %215 : vector<1x4x8x128xf32> to vector<4x8x128xf32>
      %217 = vector.shape_cast %214 : vector<4x8x128xf32> to vector<1x4x8x128xf32>
      tpu.vector_store %arg6[%c0_157, %c0_158, %c0_159, %c0_160], %217 {strides = array<i32>} : memref<1x4x8x128xf32, #tpu.memory_space<vmem>>, vector<1x4x8x128xf32>,
      %cst_161 = arith.constant 0.000000e+00 : f32
      %218 = vector.broadcast %cst_161 : f32 to vector<4x8x128xf32>
      %c0_162 = arith.constant 0 : index
      %c0_163 = arith.constant 0 : index
      %c0_164 = arith.constant 0 : index
      %c0_165 = arith.constant 0 : index
      %219 = vector.load %arg7[%c0_162, %c0_163, %c0_164, %c0_165] : memref<1x4x8x128xf32, #tpu.memory_space<vmem>>, vector<1x4x8x128xf32>
      %220 = vector.shape_cast %219 : vector<1x4x8x128xf32> to vector<4x8x128xf32>
      %221 = vector.shape_cast %218 : vector<4x8x128xf32> to vector<1x4x8x128xf32>
      tpu.vector_store %arg7[%c0_162, %c0_163, %c0_164, %c0_165], %221 {strides = array<i32>} : memref<1x4x8x128xf32, #tpu.memory_space<vmem>>, vector<1x4x8x128xf32>,
    } else {
    }
    %c0 = arith.constant 0 : index
    %c0_1 = arith.constant 0 : index
    %c0_2 = arith.constant 0 : index
    %3 = vector.load %arg3[%c0, %c0_1, %c0_2] : memref<1x8x128xi32, #tpu.memory_space<vmem>>, vector<1x8x128xi32>
    %4 = vector.shape_cast %3 : vector<1x8x128xi32> to vector<8x128xi32>
    %5 = tpu.iota {dimensions = array<i32: 0>} : vector<8x128xi32>
    %6 = tpu.iota {dimensions = array<i32: 1>} : vector<8x128xi32>
    %c8_i32 = arith.constant 8 : i32
    %7 = arith.muli %arg1, %c8_i32 : i32
    %8 = vector.broadcast %7 : i32 to vector<8x128xi32>
    %9 = arith.addi %8, %5 : vector<8x128xi32>
    %c128_i32 = arith.constant 128 : i32
    %10 = vector.broadcast %c128_i32 : i32 to vector<8x128xi32>
    %11 = arith.muli %9, %10 : vector<8x128xi32>
    %12 = arith.addi %11, %6 : vector<8x128xi32>
    %c256_i32 = arith.constant 256 : i32
    %13 = vector.broadcast %c256_i32 : i32 to vector<8x128xi32>
    %14 = arith.cmpi slt, %12, %13 : vector<8x128xi32>
    %c0_3 = arith.constant 0 : index
    %c0_4 = arith.constant 0 : index
    %c0_5 = arith.constant 0 : index
    %c0_6 = arith.constant 0 : index
    %15 = vector.load %arg2[%c0_3, %c0_4, %c0_5, %c0_6] : memref<1x4x8x128xf32, #tpu.memory_space<vmem>>, vector<1x1x8x128xf32>
    %16 = vector.shape_cast %15 : vector<1x1x8x128xf32> to vector<8x128xf32>
    %cst = arith.constant 0.000000e+00 : f32
    %17 = vector.broadcast %cst : f32 to vector<8x128xf32>
    %18 = arith.select %14, %16, %17 : vector<8x128xi1>, vector<8x128xf32>
    %c0_7 = arith.constant 0 : index
    %c1 = arith.constant 1 : index
    %c0_8 = arith.constant 0 : index
    %c0_9 = arith.constant 0 : index
    %19 = vector.load %arg2[%c0_7, %c1, %c0_8, %c0_9] : memref<1x4x8x128xf32, #tpu.memory_space<vmem>>, vector<1x1x8x128xf32>
    %20 = vector.shape_cast %19 : vector<1x1x8x128xf32> to vector<8x128xf32>
    %cst_10 = arith.constant 0.000000e+00 : f32
    %21 = vector.broadcast %cst_10 : f32 to vector<8x128xf32>
    %22 = arith.select %14, %20, %21 : vector<8x128xi1>, vector<8x128xf32>
    %c0_11 = arith.constant 0 : index
    %c2 = arith.constant 2 : index
    %c0_12 = arith.constant 0 : index
    %c0_13 = arith.constant 0 : index
    %23 = vector.load %arg2[%c0_11, %c2, %c0_12, %c0_13] : memref<1x4x8x128xf32, #tpu.memory_space<vmem>>, vector<1x1x8x128xf32>
    %24 = vector.shape_cast %23 : vector<1x1x8x128xf32> to vector<8x128xf32>
    %cst_14 = arith.constant 0.000000e+00 : f32
    %25 = vector.broadcast %cst_14 : f32 to vector<8x128xf32>
    %26 = arith.select %14, %24, %25 : vector<8x128xi1>, vector<8x128xf32>
    %c0_15 = arith.constant 0 : index
    %c3 = arith.constant 3 : index
    %c0_16 = arith.constant 0 : index
    %c0_17 = arith.constant 0 : index
    %27 = vector.load %arg2[%c0_15, %c3, %c0_16, %c0_17] : memref<1x4x8x128xf32, #tpu.memory_space<vmem>>, vector<1x1x8x128xf32>
    %28 = vector.shape_cast %27 : vector<1x1x8x128xf32> to vector<8x128xf32>
    %cst_18 = arith.constant 0.000000e+00 : f32
    %29 = vector.broadcast %cst_18 : f32 to vector<8x128xf32>
    %30 = arith.select %14, %28, %29 : vector<8x128xi1>, vector<8x128xf32>
    %31 = arith.maximumf %18, %22 : vector<8x128xf32>
    %32 = arith.maximumf %31, %26 : vector<8x128xf32>
    %33 = arith.maximumf %32, %30 : vector<8x128xf32>
    %34 = arith.subf %18, %33 : vector<8x128xf32>
    %35 = math.exp %34 : vector<8x128xf32>
    %36 = arith.subf %22, %33 : vector<8x128xf32>
    %37 = math.exp %36 : vector<8x128xf32>
    %38 = arith.subf %26, %33 : vector<8x128xf32>
    %39 = math.exp %38 : vector<8x128xf32>
    %40 = arith.subf %30, %33 : vector<8x128xf32>
    %41 = math.exp %40 : vector<8x128xf32>
    %42 = arith.addf %35, %37 : vector<8x128xf32>
    %43 = arith.addf %42, %39 : vector<8x128xf32>
    %44 = arith.addf %43, %41 : vector<8x128xf32>
    %45 = math.log %44 : vector<8x128xf32>
    %46 = arith.addf %45, %33 : vector<8x128xf32>
    %47 = tpu.reciprocal %44 {approx = true} : vector<8x128xf32> -> vector<8x128xf32>
    %48 = arith.mulf %44, %47 : vector<8x128xf32>
    %cst_19 = arith.constant 2.000000e+00 : f32
    %49 = vector.broadcast %cst_19 : f32 to vector<8x128xf32>
    %50 = arith.subf %49, %48 : vector<8x128xf32>
    %51 = arith.mulf %47, %50 : vector<8x128xf32>
    %cst_20 = arith.constant 0.000000e+00 : f32
    %52 = vector.broadcast %cst_20 : f32 to vector<8x128xf32>
    %53 = arith.select %14, %51, %52 : vector<8x128xi1>, vector<8x128xf32>
    %cst_21 = arith.constant 0.000000e+00 : f32
    %54 = vector.broadcast %cst_21 : f32 to vector<8x128xf32>
    %c0_i32_22 = arith.constant 0 : i32
    %55 = vector.broadcast %c0_i32_22 : i32 to vector<8x128xi32>
    %56 = arith.cmpi eq, %4, %55 : vector<8x128xi32>
    %57 = arith.andi %56, %14 : vector<8x128xi1>
    %cst_23 = arith.constant 0.000000e+00 : f32
    %58 = vector.broadcast %cst_23 : f32 to vector<8x128xf32>
    %59 = arith.select %57, %18, %58 : vector<8x128xi1>, vector<8x128xf32>
    %60 = arith.addf %54, %59 : vector<8x128xf32>
    %61 = arith.mulf %35, %53 : vector<8x128xf32>
    %c0_24 = arith.constant 0 : index
    %c0_25 = arith.constant 0 : index
    %c0_26 = arith.constant 0 : index
    %c0_27 = arith.constant 0 : index
    %62 = vector.load %arg5[%c0_24, %c0_25, %c0_26, %c0_27] : memref<1x4x8x128xf32, #tpu.memory_space<vmem>>, vector<1x1x8x128xf32>
    %63 = vector.shape_cast %62 : vector<1x1x8x128xf32> to vector<8x128xf32>
    %cst_28 = arith.constant 0.000000e+00 : f32
    %64 = vector.broadcast %cst_28 : f32 to vector<8x128xf32>
    %65 = arith.select %57, %61, %64 : vector<8x128xi1>, vector<8x128xf32>
    %66 = vector.shape_cast %65 : vector<8x128xf32> to vector<1x8x128xf32>
    %cst_29 = arith.constant dense<0.000000e+00> : vector<8x128xf32>
    %67 = vector.multi_reduction <add>, %66, %cst_29 [0] : vector<1x8x128xf32> to vector<8x128xf32>
    %68 = arith.addf %63, %67 : vector<8x128xf32>
    %c0_30 = arith.constant 0 : index
    %c0_31 = arith.constant 0 : index
    %c0_32 = arith.constant 0 : index
    %c0_33 = arith.constant 0 : index
    %69 = vector.load %arg5[%c0_30, %c0_31, %c0_32, %c0_33] : memref<1x4x8x128xf32, #tpu.memory_space<vmem>>, vector<1x1x8x128xf32>
    %70 = vector.shape_cast %69 : vector<1x1x8x128xf32> to vector<8x128xf32>
    %71 = vector.shape_cast %68 : vector<8x128xf32> to vector<1x1x8x128xf32>
    tpu.vector_store %arg5[%c0_30, %c0_31, %c0_32, %c0_33], %71 {strides = array<i32>} : memref<1x4x8x128xf32, #tpu.memory_space<vmem>>, vector<1x1x8x128xf32>,
    %c0_34 = arith.constant 0 : index
    %c0_35 = arith.constant 0 : index
    %c0_36 = arith.constant 0 : index
    %c0_37 = arith.constant 0 : index
    %72 = vector.load %arg6[%c0_34, %c0_35, %c0_36, %c0_37] : memref<1x4x8x128xf32, #tpu.memory_space<vmem>>, vector<1x1x8x128xf32>
    %73 = vector.shape_cast %72 : vector<1x1x8x128xf32> to vector<8x128xf32>
    %74 = vector.shape_cast %61 : vector<8x128xf32> to vector<1x8x128xf32>
    %cst_38 = arith.constant dense<0.000000e+00> : vector<8x128xf32>
    %75 = vector.multi_reduction <add>, %74, %cst_38 [0] : vector<1x8x128xf32> to vector<8x128xf32>
    %76 = arith.addf %73, %75 : vector<8x128xf32>
    %c0_39 = arith.constant 0 : index
    %c0_40 = arith.constant 0 : index
    %c0_41 = arith.constant 0 : index
    %c0_42 = arith.constant 0 : index
    %77 = vector.load %arg6[%c0_39, %c0_40, %c0_41, %c0_42] : memref<1x4x8x128xf32, #tpu.memory_space<vmem>>, vector<1x1x8x128xf32>
    %78 = vector.shape_cast %77 : vector<1x1x8x128xf32> to vector<8x128xf32>
    %79 = vector.shape_cast %76 : vector<8x128xf32> to vector<1x1x8x128xf32>
    tpu.vector_store %arg6[%c0_39, %c0_40, %c0_41, %c0_42], %79 {strides = array<i32>} : memref<1x4x8x128xf32, #tpu.memory_space<vmem>>, vector<1x1x8x128xf32>,
    %c0_43 = arith.constant 0 : index
    %c0_44 = arith.constant 0 : index
    %c0_45 = arith.constant 0 : index
    %c0_46 = arith.constant 0 : index
    %80 = vector.load %arg7[%c0_43, %c0_44, %c0_45, %c0_46] : memref<1x4x8x128xf32, #tpu.memory_space<vmem>>, vector<1x1x8x128xf32>
    %81 = vector.shape_cast %80 : vector<1x1x8x128xf32> to vector<8x128xf32>
    %82 = arith.extui %57 : vector<8x128xi1> to vector<8x128xi32>
    %83 = arith.sitofp %82 : vector<8x128xi32> to vector<8x128xf32>
    %84 = vector.shape_cast %83 : vector<8x128xf32> to vector<1x8x128xf32>
    %cst_47 = arith.constant dense<0.000000e+00> : vector<8x128xf32>
    %85 = vector.multi_reduction <add>, %84, %cst_47 [0] : vector<1x8x128xf32> to vector<8x128xf32>
    %86 = arith.addf %81, %85 : vector<8x128xf32>
    %c0_48 = arith.constant 0 : index
    %c0_49 = arith.constant 0 : index
    %c0_50 = arith.constant 0 : index
    %c0_51 = arith.constant 0 : index
    %87 = vector.load %arg7[%c0_48, %c0_49, %c0_50, %c0_51] : memref<1x4x8x128xf32, #tpu.memory_space<vmem>>, vector<1x1x8x128xf32>
    %88 = vector.shape_cast %87 : vector<1x1x8x128xf32> to vector<8x128xf32>
    %89 = vector.shape_cast %86 : vector<8x128xf32> to vector<1x1x8x128xf32>
    tpu.vector_store %arg7[%c0_48, %c0_49, %c0_50, %c0_51], %89 {strides = array<i32>} : memref<1x4x8x128xf32, #tpu.memory_space<vmem>>, vector<1x1x8x128xf32>,
    %c1_i32 = arith.constant 1 : i32
    %90 = vector.broadcast %c1_i32 : i32 to vector<8x128xi32>
    %91 = arith.cmpi eq, %4, %90 : vector<8x128xi32>
    %92 = arith.andi %91, %14 : vector<8x128xi1>
    %cst_52 = arith.constant 0.000000e+00 : f32
    %93 = vector.broadcast %cst_52 : f32 to vector<8x128xf32>
    %94 = arith.select %92, %22, %93 : vector<8x128xi1>, vector<8x128xf32>
    %95 = arith.addf %60, %94 : vector<8x128xf32>
    %96 = arith.mulf %37, %53 : vector<8x128xf32>
    %c0_53 = arith.constant 0 : index
    %c1_54 = arith.constant 1 : index
    %c0_55 = arith.constant 0 : index
    %c0_56 = arith.constant 0 : index
    %97 = vector.load %arg5[%c0_53, %c1_54, %c0_55, %c0_56] : memref<1x4x8x128xf32, #tpu.memory_space<vmem>>, vector<1x1x8x128xf32>
    %98 = vector.shape_cast %97 : vector<1x1x8x128xf32> to vector<8x128xf32>
    %cst_57 = arith.constant 0.000000e+00 : f32
    %99 = vector.broadcast %cst_57 : f32 to vector<8x128xf32>
    %100 = arith.select %92, %96, %99 : vector<8x128xi1>, vector<8x128xf32>
    %101 = vector.shape_cast %100 : vector<8x128xf32> to vector<1x8x128xf32>
    %cst_58 = arith.constant dense<0.000000e+00> : vector<8x128xf32>
    %102 = vector.multi_reduction <add>, %101, %cst_58 [0] : vector<1x8x128xf32> to vector<8x128xf32>
    %103 = arith.addf %98, %102 : vector<8x128xf32>
    %c0_59 = arith.constant 0 : index
    %c1_60 = arith.constant 1 : index
    %c0_61 = arith.constant 0 : index
    %c0_62 = arith.constant 0 : index
    %104 = vector.load %arg5[%c0_59, %c1_60, %c0_61, %c0_62] : memref<1x4x8x128xf32, #tpu.memory_space<vmem>>, vector<1x1x8x128xf32>
    %105 = vector.shape_cast %104 : vector<1x1x8x128xf32> to vector<8x128xf32>
    %106 = vector.shape_cast %103 : vector<8x128xf32> to vector<1x1x8x128xf32>
    tpu.vector_store %arg5[%c0_59, %c1_60, %c0_61, %c0_62], %106 {strides = array<i32>} : memref<1x4x8x128xf32, #tpu.memory_space<vmem>>, vector<1x1x8x128xf32>,
    %c0_63 = arith.constant 0 : index
    %c1_64 = arith.constant 1 : index
    %c0_65 = arith.constant 0 : index
    %c0_66 = arith.constant 0 : index
    %107 = vector.load %arg6[%c0_63, %c1_64, %c0_65, %c0_66] : memref<1x4x8x128xf32, #tpu.memory_space<vmem>>, vector<1x1x8x128xf32>
    %108 = vector.shape_cast %107 : vector<1x1x8x128xf32> to vector<8x128xf32>
    %109 = vector.shape_cast %96 : vector<8x128xf32> to vector<1x8x128xf32>
    %cst_67 = arith.constant dense<0.000000e+00> : vector<8x128xf32>
    %110 = vector.multi_reduction <add>, %109, %cst_67 [0] : vector<1x8x128xf32> to vector<8x128xf32>
    %111 = arith.addf %108, %110 : vector<8x128xf32>
    %c0_68 = arith.constant 0 : index
    %c1_69 = arith.constant 1 : index
    %c0_70 = arith.constant 0 : index
    %c0_71 = arith.constant 0 : index
    %112 = vector.load %arg6[%c0_68, %c1_69, %c0_70, %c0_71] : memref<1x4x8x128xf32, #tpu.memory_space<vmem>>, vector<1x1x8x128xf32>
    %113 = vector.shape_cast %112 : vector<1x1x8x128xf32> to vector<8x128xf32>
    %114 = vector.shape_cast %111 : vector<8x128xf32> to vector<1x1x8x128xf32>
    tpu.vector_store %arg6[%c0_68, %c1_69, %c0_70, %c0_71], %114 {strides = array<i32>} : memref<1x4x8x128xf32, #tpu.memory_space<vmem>>, vector<1x1x8x128xf32>,
    %c0_72 = arith.constant 0 : index
    %c1_73 = arith.constant 1 : index
    %c0_74 = arith.constant 0 : index
    %c0_75 = arith.constant 0 : index
    %115 = vector.load %arg7[%c0_72, %c1_73, %c0_74, %c0_75] : memref<1x4x8x128xf32, #tpu.memory_space<vmem>>, vector<1x1x8x128xf32>
    %116 = vector.shape_cast %115 : vector<1x1x8x128xf32> to vector<8x128xf32>
    %117 = arith.extui %92 : vector<8x128xi1> to vector<8x128xi32>
    %118 = arith.sitofp %117 : vector<8x128xi32> to vector<8x128xf32>
    %119 = vector.shape_cast %118 : vector<8x128xf32> to vector<1x8x128xf32>
    %cst_76 = arith.constant dense<0.000000e+00> : vector<8x128xf32>
    %120 = vector.multi_reduction <add>, %119, %cst_76 [0] : vector<1x8x128xf32> to vector<8x128xf32>
    %121 = arith.addf %116, %120 : vector<8x128xf32>
    %c0_77 = arith.constant 0 : index
    %c1_78 = arith.constant 1 : index
    %c0_79 = arith.constant 0 : index
    %c0_80 = arith.constant 0 : index
    %122 = vector.load %arg7[%c0_77, %c1_78, %c0_79, %c0_80] : memref<1x4x8x128xf32, #tpu.memory_space<vmem>>, vector<1x1x8x128xf32>
    %123 = vector.shape_cast %122 : vector<1x1x8x128xf32> to vector<8x128xf32>
    %124 = vector.shape_cast %121 : vector<8x128xf32> to vector<1x1x8x128xf32>
    tpu.vector_store %arg7[%c0_77, %c1_78, %c0_79, %c0_80], %124 {strides = array<i32>} : memref<1x4x8x128xf32, #tpu.memory_space<vmem>>, vector<1x1x8x128xf32>,
    %c2_i32 = arith.constant 2 : i32
    %125 = vector.broadcast %c2_i32 : i32 to vector<8x128xi32>
    %126 = arith.cmpi eq, %4, %125 : vector<8x128xi32>
    %127 = arith.andi %126, %14 : vector<8x128xi1>
    %cst_81 = arith.constant 0.000000e+00 : f32
    %128 = vector.broadcast %cst_81 : f32 to vector<8x128xf32>
    %129 = arith.select %127, %26, %128 : vector<8x128xi1>, vector<8x128xf32>
    %130 = arith.addf %95, %129 : vector<8x128xf32>
    %131 = arith.mulf %39, %53 : vector<8x128xf32>
    %c0_82 = arith.constant 0 : index
    %c2_83 = arith.constant 2 : index
    %c0_84 = arith.constant 0 : index
    %c0_85 = arith.constant 0 : index
    %132 = vector.load %arg5[%c0_82, %c2_83, %c0_84, %c0_85] : memref<1x4x8x128xf32, #tpu.memory_space<vmem>>, vector<1x1x8x128xf32>
    %133 = vector.shape_cast %132 : vector<1x1x8x128xf32> to vector<8x128xf32>
    %cst_86 = arith.constant 0.000000e+00 : f32
    %134 = vector.broadcast %cst_86 : f32 to vector<8x128xf32>
    %135 = arith.select %127, %131, %134 : vector<8x128xi1>, vector<8x128xf32>
    %136 = vector.shape_cast %135 : vector<8x128xf32> to vector<1x8x128xf32>
    %cst_87 = arith.constant dense<0.000000e+00> : vector<8x128xf32>
    %137 = vector.multi_reduction <add>, %136, %cst_87 [0] : vector<1x8x128xf32> to vector<8x128xf32>
    %138 = arith.addf %133, %137 : vector<8x128xf32>
    %c0_88 = arith.constant 0 : index
    %c2_89 = arith.constant 2 : index
    %c0_90 = arith.constant 0 : index
    %c0_91 = arith.constant 0 : index
    %139 = vector.load %arg5[%c0_88, %c2_89, %c0_90, %c0_91] : memref<1x4x8x128xf32, #tpu.memory_space<vmem>>, vector<1x1x8x128xf32>
    %140 = vector.shape_cast %139 : vector<1x1x8x128xf32> to vector<8x128xf32>
    %141 = vector.shape_cast %138 : vector<8x128xf32> to vector<1x1x8x128xf32>
    tpu.vector_store %arg5[%c0_88, %c2_89, %c0_90, %c0_91], %141 {strides = array<i32>} : memref<1x4x8x128xf32, #tpu.memory_space<vmem>>, vector<1x1x8x128xf32>,
    %c0_92 = arith.constant 0 : index
    %c2_93 = arith.constant 2 : index
    %c0_94 = arith.constant 0 : index
    %c0_95 = arith.constant 0 : index
    %142 = vector.load %arg6[%c0_92, %c2_93, %c0_94, %c0_95] : memref<1x4x8x128xf32, #tpu.memory_space<vmem>>, vector<1x1x8x128xf32>
    %143 = vector.shape_cast %142 : vector<1x1x8x128xf32> to vector<8x128xf32>
    %144 = vector.shape_cast %131 : vector<8x128xf32> to vector<1x8x128xf32>
    %cst_96 = arith.constant dense<0.000000e+00> : vector<8x128xf32>
    %145 = vector.multi_reduction <add>, %144, %cst_96 [0] : vector<1x8x128xf32> to vector<8x128xf32>
    %146 = arith.addf %143, %145 : vector<8x128xf32>
    %c0_97 = arith.constant 0 : index
    %c2_98 = arith.constant 2 : index
    %c0_99 = arith.constant 0 : index
    %c0_100 = arith.constant 0 : index
    %147 = vector.load %arg6[%c0_97, %c2_98, %c0_99, %c0_100] : memref<1x4x8x128xf32, #tpu.memory_space<vmem>>, vector<1x1x8x128xf32>
    %148 = vector.shape_cast %147 : vector<1x1x8x128xf32> to vector<8x128xf32>
    %149 = vector.shape_cast %146 : vector<8x128xf32> to vector<1x1x8x128xf32>
    tpu.vector_store %arg6[%c0_97, %c2_98, %c0_99, %c0_100], %149 {strides = array<i32>} : memref<1x4x8x128xf32, #tpu.memory_space<vmem>>, vector<1x1x8x128xf32>,
    %c0_101 = arith.constant 0 : index
    %c2_102 = arith.constant 2 : index
    %c0_103 = arith.constant 0 : index
    %c0_104 = arith.constant 0 : index
    %150 = vector.load %arg7[%c0_101, %c2_102, %c0_103, %c0_104] : memref<1x4x8x128xf32, #tpu.memory_space<vmem>>, vector<1x1x8x128xf32>
    %151 = vector.shape_cast %150 : vector<1x1x8x128xf32> to vector<8x128xf32>
    %152 = arith.extui %127 : vector<8x128xi1> to vector<8x128xi32>
    %153 = arith.sitofp %152 : vector<8x128xi32> to vector<8x128xf32>
    %154 = vector.shape_cast %153 : vector<8x128xf32> to vector<1x8x128xf32>
    %cst_105 = arith.constant dense<0.000000e+00> : vector<8x128xf32>
    %155 = vector.multi_reduction <add>, %154, %cst_105 [0] : vector<1x8x128xf32> to vector<8x128xf32>
    %156 = arith.addf %151, %155 : vector<8x128xf32>
    %c0_106 = arith.constant 0 : index
    %c2_107 = arith.constant 2 : index
    %c0_108 = arith.constant 0 : index
    %c0_109 = arith.constant 0 : index
    %157 = vector.load %arg7[%c0_106, %c2_107, %c0_108, %c0_109] : memref<1x4x8x128xf32, #tpu.memory_space<vmem>>, vector<1x1x8x128xf32>
    %158 = vector.shape_cast %157 : vector<1x1x8x128xf32> to vector<8x128xf32>
    %159 = vector.shape_cast %156 : vector<8x128xf32> to vector<1x1x8x128xf32>
    tpu.vector_store %arg7[%c0_106, %c2_107, %c0_108, %c0_109], %159 {strides = array<i32>} : memref<1x4x8x128xf32, #tpu.memory_space<vmem>>, vector<1x1x8x128xf32>,
    %c3_i32 = arith.constant 3 : i32
    %160 = vector.broadcast %c3_i32 : i32 to vector<8x128xi32>
    %161 = arith.cmpi eq, %4, %160 : vector<8x128xi32>
    %162 = arith.andi %161, %14 : vector<8x128xi1>
    %cst_110 = arith.constant 0.000000e+00 : f32
    %163 = vector.broadcast %cst_110 : f32 to vector<8x128xf32>
    %164 = arith.select %162, %30, %163 : vector<8x128xi1>, vector<8x128xf32>
    %165 = arith.addf %130, %164 : vector<8x128xf32>
    %166 = arith.mulf %41, %53 : vector<8x128xf32>
    %c0_111 = arith.constant 0 : index
    %c3_112 = arith.constant 3 : index
    %c0_113 = arith.constant 0 : index
    %c0_114 = arith.constant 0 : index
    %167 = vector.load %arg5[%c0_111, %c3_112, %c0_113, %c0_114] : memref<1x4x8x128xf32, #tpu.memory_space<vmem>>, vector<1x1x8x128xf32>
    %168 = vector.shape_cast %167 : vector<1x1x8x128xf32> to vector<8x128xf32>
    %cst_115 = arith.constant 0.000000e+00 : f32
    %169 = vector.broadcast %cst_115 : f32 to vector<8x128xf32>
    %170 = arith.select %162, %166, %169 : vector<8x128xi1>, vector<8x128xf32>
    %171 = vector.shape_cast %170 : vector<8x128xf32> to vector<1x8x128xf32>
    %cst_116 = arith.constant dense<0.000000e+00> : vector<8x128xf32>
    %172 = vector.multi_reduction <add>, %171, %cst_116 [0] : vector<1x8x128xf32> to vector<8x128xf32>
    %173 = arith.addf %168, %172 : vector<8x128xf32>
    %c0_117 = arith.constant 0 : index
    %c3_118 = arith.constant 3 : index
    %c0_119 = arith.constant 0 : index
    %c0_120 = arith.constant 0 : index
    %174 = vector.load %arg5[%c0_117, %c3_118, %c0_119, %c0_120] : memref<1x4x8x128xf32, #tpu.memory_space<vmem>>, vector<1x1x8x128xf32>
    %175 = vector.shape_cast %174 : vector<1x1x8x128xf32> to vector<8x128xf32>
    %176 = vector.shape_cast %173 : vector<8x128xf32> to vector<1x1x8x128xf32>
    tpu.vector_store %arg5[%c0_117, %c3_118, %c0_119, %c0_120], %176 {strides = array<i32>} : memref<1x4x8x128xf32, #tpu.memory_space<vmem>>, vector<1x1x8x128xf32>,
    %c0_121 = arith.constant 0 : index
    %c3_122 = arith.constant 3 : index
    %c0_123 = arith.constant 0 : index
    %c0_124 = arith.constant 0 : index
    %177 = vector.load %arg6[%c0_121, %c3_122, %c0_123, %c0_124] : memref<1x4x8x128xf32, #tpu.memory_space<vmem>>, vector<1x1x8x128xf32>
    %178 = vector.shape_cast %177 : vector<1x1x8x128xf32> to vector<8x128xf32>
    %179 = vector.shape_cast %166 : vector<8x128xf32> to vector<1x8x128xf32>
    %cst_125 = arith.constant dense<0.000000e+00> : vector<8x128xf32>
    %180 = vector.multi_reduction <add>, %179, %cst_125 [0] : vector<1x8x128xf32> to vector<8x128xf32>
    %181 = arith.addf %178, %180 : vector<8x128xf32>
    %c0_126 = arith.constant 0 : index
    %c3_127 = arith.constant 3 : index
    %c0_128 = arith.constant 0 : index
    %c0_129 = arith.constant 0 : index
    %182 = vector.load %arg6[%c0_126, %c3_127, %c0_128, %c0_129] : memref<1x4x8x128xf32, #tpu.memory_space<vmem>>, vector<1x1x8x128xf32>
    %183 = vector.shape_cast %182 : vector<1x1x8x128xf32> to vector<8x128xf32>
    %184 = vector.shape_cast %181 : vector<8x128xf32> to vector<1x1x8x128xf32>
    tpu.vector_store %arg6[%c0_126, %c3_127, %c0_128, %c0_129], %184 {strides = array<i32>} : memref<1x4x8x128xf32, #tpu.memory_space<vmem>>, vector<1x1x8x128xf32>,
    %c0_130 = arith.constant 0 : index
    %c3_131 = arith.constant 3 : index
    %c0_132 = arith.constant 0 : index
    %c0_133 = arith.constant 0 : index
    %185 = vector.load %arg7[%c0_130, %c3_131, %c0_132, %c0_133] : memref<1x4x8x128xf32, #tpu.memory_space<vmem>>, vector<1x1x8x128xf32>
    %186 = vector.shape_cast %185 : vector<1x1x8x128xf32> to vector<8x128xf32>
    %187 = arith.extui %162 : vector<8x128xi1> to vector<8x128xi32>
    %188 = arith.sitofp %187 : vector<8x128xi32> to vector<8x128xf32>
    %189 = vector.shape_cast %188 : vector<8x128xf32> to vector<1x8x128xf32>
    %cst_134 = arith.constant dense<0.000000e+00> : vector<8x128xf32>
    %190 = vector.multi_reduction <add>, %189, %cst_134 [0] : vector<1x8x128xf32> to vector<8x128xf32>
    %191 = arith.addf %186, %190 : vector<8x128xf32>
    %c0_135 = arith.constant 0 : index
    %c3_136 = arith.constant 3 : index
    %c0_137 = arith.constant 0 : index
    %c0_138 = arith.constant 0 : index
    %192 = vector.load %arg7[%c0_135, %c3_136, %c0_137, %c0_138] : memref<1x4x8x128xf32, #tpu.memory_space<vmem>>, vector<1x1x8x128xf32>
    %193 = vector.shape_cast %192 : vector<1x1x8x128xf32> to vector<8x128xf32>
    %194 = vector.shape_cast %191 : vector<8x128xf32> to vector<1x1x8x128xf32>
    tpu.vector_store %arg7[%c0_135, %c3_136, %c0_137, %c0_138], %194 {strides = array<i32>} : memref<1x4x8x128xf32, #tpu.memory_space<vmem>>, vector<1x1x8x128xf32>,
    %195 = arith.subf %46, %165 : vector<8x128xf32>
    %cst_139 = arith.constant 0.000000e+00 : f32
    %196 = vector.broadcast %cst_139 : f32 to vector<8x128xf32>
    %197 = arith.select %14, %195, %196 : vector<8x128xi1>, vector<8x128xf32>
    %c0_140 = arith.constant 0 : index
    %c0_141 = arith.constant 0 : index
    %c0_142 = arith.constant 0 : index
    %198 = vector.load %arg4[%c0_140, %c0_141, %c0_142] : memref<1x8x128xf32, #tpu.memory_space<vmem>>, vector<1x8x128xf32>
    %199 = vector.shape_cast %198 : vector<1x8x128xf32> to vector<8x128xf32>
    %200 = vector.shape_cast %197 : vector<8x128xf32> to vector<1x8x128xf32>
    %cst_143 = arith.constant dense<0.000000e+00> : vector<8x128xf32>
    %201 = vector.multi_reduction <add>, %200, %cst_143 [0] : vector<1x8x128xf32> to vector<8x128xf32>
    %202 = arith.addf %199, %201 : vector<8x128xf32>
    %c0_144 = arith.constant 0 : index
    %c0_145 = arith.constant 0 : index
    %c0_146 = arith.constant 0 : index
    %203 = vector.load %arg4[%c0_144, %c0_145, %c0_146] : memref<1x8x128xf32, #tpu.memory_space<vmem>>, vector<1x8x128xf32>
    %204 = vector.shape_cast %203 : vector<1x8x128xf32> to vector<8x128xf32>
    %205 = vector.shape_cast %202 : vector<8x128xf32> to vector<1x8x128xf32>
    tpu.vector_store %arg4[%c0_144, %c0_145, %c0_146], %205 {strides = array<i32>} : memref<1x8x128xf32, #tpu.memory_space<vmem>>, vector<1x8x128xf32>,
    return
  }
  func.func @transform_0(%arg0: i32, %arg1: i32) -> (i32, i32, i32, i32) {
    %c0_i32 = arith.constant 0 : i32
    %c0_i32_0 = arith.constant 0 : i32
    %c0_i32_1 = arith.constant 0 : i32
    return %arg0, %c0_i32, %arg1, %c0_i32_0 : i32, i32, i32, i32
  }
  func.func @transform_1(%arg0: i32, %arg1: i32) -> (i32, i32, i32) {
    %c0_i32 = arith.constant 0 : i32
    %c0_i32_0 = arith.constant 0 : i32
    return %arg0, %arg1, %c0_i32 : i32, i32, i32
  }
  func.func @transform_2(%arg0: i32, %arg1: i32) -> (i32, i32, i32) {
    %c0_i32 = arith.constant 0 : i32
    %c0_i32_0 = arith.constant 0 : i32
    %c0_i32_1 = arith.constant 0 : i32
    return %arg0, %c0_i32, %c0_i32_0 : i32, i32, i32
  }
  func.func @transform_3(%arg0: i32, %arg1: i32) -> (i32, i32, i32, i32) {
    %c0_i32 = arith.constant 0 : i32
    %c0_i32_0 = arith.constant 0 : i32
    %c0_i32_1 = arith.constant 0 : i32
    %c0_i32_2 = arith.constant 0 : i32
    return %arg0, %c0_i32, %c0_i32_0, %c0_i32_1 : i32, i32, i32, i32
  }
  func.func @transform_4(%arg0: i32, %arg1: i32) -> (i32, i32, i32, i32) {
    %c0_i32 = arith.constant 0 : i32
    %c0_i32_0 = arith.constant 0 : i32
    %c0_i32_1 = arith.constant 0 : i32
    %c0_i32_2 = arith.constant 0 : i32
    return %arg0, %c0_i32, %c0_i32_0, %c0_i32_1 : i32, i32, i32, i32
  }
  func.func @transform_5(%arg0: i32, %arg1: i32) -> (i32, i32, i32, i32) {
    %c0_i32 = arith.constant 0 : i32
    %c0_i32_0 = arith.constant 0 : i32
    %c0_i32_1 = arith.constant 0 : i32
    %c0_i32_2 = arith.constant 0 : i32
    return %arg0, %c0_i32, %c0_i32_0, %c0_i32_1 : i32, i32, i32, i32
  }
}

</mosaic_0001>

<llo_original>
// kernel: tpu_custom_call.1
$region0: #{tpu_custom_call.1}
  #allocation0 [shape = 'u32[]', space=smem, size = 0x4, offset = 0x4, fixed_abs, tag = 'smem constant byte address 0x4 - core index']
  #allocation1 [shape = 'u32[144,128]{1,0:T(1,128)}', space=vmem, size = 0x12000, scoped, tag = 'internal scratch']
  %s0 = inlined_call_operand.hbm [shape: f32[2,4,8,128], index: 0, kind: input, shape index: {}]
  %s1 = inlined_call_operand.hbm [shape: s32[2,8,128], index: 1, kind: input, shape index: {}]
  %s2 = inlined_call_operand.hbm [shape: f32[2,8,128], index: 2, kind: output, shape index: {0}]
  %s3 = inlined_call_operand.hbm [shape: f32[2,4,8,128], index: 3, kind: output, shape index: {1}]
  %s4 = inlined_call_operand.hbm [shape: f32[2,4,8,128], index: 4, kind: output, shape index: {2}]
  %s5 = inlined_call_operand.hbm [shape: f32[2,4,8,128], index: 5, kind: output, shape index: {3}]
  %6 = xla_tuple %s2, %s3, %s4, %s5
  %s7 = sld [smem:[#allocation0]]
  $region77: #{tpu_custom_call.1} parent=0
    _
  %s9 = ssub.s32 1, %s7
  %s10 = scalar_select 0, %s9, %s7
  $region1: #{tpu_custom_call.1} parent=0
    #allocation2 [shape = 'u8[32768]{0}', space=vmem, size = 0x8000, scoped, tag = 'input window, operand 0']
    #allocation3 [shape = 's32[2]{0}', space=sflag, size = 0x8, scoped, tag = 'scoped memory for tpu_custom_call.1']
    #allocation4 [shape = 's32[2]{0}', space=sflag, size = 0x8, scoped, tag = 'scoped memory for tpu_custom_call.1']
    #allocation5 [shape = 'u8[8192]{0}', space=vmem, size = 0x2000, scoped, tag = 'input window, operand 1']
    #allocation6 [shape = 's32[2]{0}', space=sflag, size = 0x8, scoped, tag = 'scoped memory for tpu_custom_call.1']
    #allocation7 [shape = 'u8[8192]{0}', space=vmem, size = 0x2000, scoped, tag = 'output window, operand 0']
    #allocation8 [shape = 'u8[32768]{0}', space=vmem, size = 0x8000, scoped, tag = 'output window, operand 1']
    #allocation9 [shape = 's32[2]{0}', space=sflag, size = 0x8, scoped, tag = 'scoped memory for tpu_custom_call.1']
    #allocation10 [shape = 'u8[32768]{0}', space=vmem, size = 0x8000, scoped, tag = 'output window, operand 2']
    #allocation11 [shape = 'u8[32768]{0}', space=vmem, size = 0x8000, scoped, tag = 'output window, operand 3']
    #allocation12 [shape = 's32[2]{0}', space=sflag, size = 0x8, scoped, tag = 'scoped memory for tpu_custom_call.1']
    %11 = vsyncpa [#allocation3], 0
    %s12 = scalar_lea.sflag [#allocation3], 1
    %13 = vsyncpa %s12, 0
    %14 = vsyncpa [#allocation6], 0
    %s15 = scalar_lea.sflag [#allocation6], 1
    %16 = vsyncpa %s15, 0
    %17 = vsyncpa [#allocation4], 0
    %s18 = scalar_lea.sflag [#allocation4], 1
    %19 = vsyncpa %s18, 0
    %20 = vsyncpa [#allocation9], 0
    %s21 = scalar_lea.sflag [#allocation9], 1
    %22 = vsyncpa %s21, 0
    %23 = vsyncpa [#allocation12], 0
    %s24 = scalar_lea.sflag [#allocation12], 1
    %25 = vsyncpa %s24, 0
    loop: start=0, step=1, limit=4
    $region2: #{tpu_custom_call.1} parent=1 // loop_pre_header
      _
    $region3: #{tpu_custom_call.1} parent=1 // loop_header
      %s27 = sphi 0, %s31
      %p28 = scmp.ge.s32.totalorder %s27, 4
      %s34 = sphi 0, %s46
      %s35 = sphi 0, %s42
      %s36 = sphi 0, %s34
      %s37 = sphi 0, %s35
      %s38 = sphi 0, %s36
      %s39 = sphi 0, %s37
      %s51 = sphi 0, %s53
      %s54 = sphi 0, %s51
      %s55 = sphi 0, %s54
      %s71 = sphi 0, %s55
      %s79 = sphi 0, %s81
      %s82 = sphi 0, %s79
      %s83 = sphi 0, %s82
      %s99 = sphi 0, %s83
      %s105 = sphi 0, %s107
      %s108 = sphi 0, %s105
      %s109 = sphi 0, %s108
      %s125 = sphi 0, %s109
      %s131 = sphi 0, %s133
      %s134 = sphi 0, %s131
      %s135 = sphi 0, %s134
      %s151 = sphi 0, %s135
      %s157 = sphi 0, %s159
      %s160 = sphi 0, %s157
      %s161 = sphi 0, %s160
      %s177 = sphi 0, %s161
      %s183 = sphi 0, %s185
      %s186 = sphi 0, %s183
      %s187 = sphi 0, %s186
      %s203 = sphi 0, %s187
    $region4: #{tpu_custom_call.1} parent=1 // loop_header_branch
      %30 = sbr.rel (%p28) target = $region8
    $region5: #{tpu_custom_call.1} parent=1 // loop_body
      %s32 = ssub.s32 %s27, 1
      %s33 = ssub.s32 %s27, 2
      %s40 = sadd.s32 1, %s35
      %p41 = scmp.ge.s32.totalorder %s40, 1
      %s42 = scalar_select %p41, 0, %s40
      %s43 = sadd.s32 1, %s34
      %s44 = scalar_select %p41, %s43, %s34
      %p45 = scmp.ge.s32.totalorder %s44, 2
      %s46 = scalar_select %p45, 0, %s44
      %s47 = ssub.s32 %s34, %s46
      %s48 = ssub.s32 %s35, %s42
      %s49 = sor.u32 %s47, %s48
      %p50 = scmp.eq.s32.totalorder %s49, 0
      %s52 = sadd.s32 %s51, 1
      %s53 = scalar_select %p50, %s51, %s52
      %p56 = pneg %p50
      %p57 = scmp.eq.s32.totalorder %s27, 1
      %p58 = por %p56, %p57
      %p59 = scmp.ne.s32.totalorder %s51, %s54
      %p60 = scmp.eq.s32.totalorder %s27, 0
      %p61 = por %p59, %p60
      %p62 = scmp.ne.s32.totalorder %s51, %s54
      %p63 = scmp.eq.s32.totalorder %s32, 1
      %p64 = por %p62, %p63
      %p65 = scmp.ne.s32.totalorder %s54, %s55
      %p66 = scmp.eq.s32.totalorder %s32, 0
      %p67 = por %p65, %p66
      %p68 = scmp.ne.s32.totalorder %s54, %s55
      %p69 = scmp.eq.s32.totalorder %s33, 1
      %p70 = por %p68, %p69
      %p72 = scmp.ne.s32.totalorder %s55, %s71
      %p73 = scmp.eq.s32.totalorder %s33, 0
      %p74 = por %p72, %p73
      %s75 = ssub.s32 %s34, %s46
      %s76 = ssub.s32 %s35, %s42
      %s77 = sor.u32 %s75, %s76
      %p78 = scmp.eq.s32.totalorder %s77, 0
      %s80 = sadd.s32 %s79, 1
      %s81 = scalar_select %p78, %s79, %s80
      %p84 = pneg %p78
      %p85 = scmp.eq.s32.totalorder %s27, 1
      %p86 = por %p84, %p85
      %p87 = scmp.ne.s32.totalorder %s79, %s82
      %p88 = scmp.eq.s32.totalorder %s27, 0
      %p89 = por %p87, %p88
      %p90 = scmp.ne.s32.totalorder %s79, %s82
      %p91 = scmp.eq.s32.totalorder %s32, 1
      %p92 = por %p90, %p91
      %p93 = scmp.ne.s32.totalorder %s82, %s83
      %p94 = scmp.eq.s32.totalorder %s32, 0
      %p95 = por %p93, %p94
      %p96 = scmp.ne.s32.totalorder %s82, %s83
      %p97 = scmp.eq.s32.totalorder %s33, 1
      %p98 = por %p96, %p97
      %p100 = scmp.ne.s32.totalorder %s83, %s99
      %p101 = scmp.eq.s32.totalorder %s33, 0
      %p102 = por %p100, %p101
      %s103 = ssub.s32 %s34, %s46
      %p104 = scmp.eq.s32.totalorder %s103, 0
      %s106 = sadd.s32 %s105, 1
      %s107 = scalar_select %p104, %s105, %s106
      %p110 = pneg %p104
      %p111 = scmp.eq.s32.totalorder %s27, 1
      %p112 = por %p110, %p111
      %p113 = scmp.ne.s32.totalorder %s105, %s108
      %p114 = scmp.eq.s32.totalorder %s27, 0
      %p115 = por %p113, %p114
      %p116 = scmp.ne.s32.totalorder %s105, %s108
      %p117 = scmp.eq.s32.totalorder %s32, 1
      %p118 = por %p116, %p117
      %p119 = scmp.ne.s32.totalorder %s108, %s109
      %p120 = scmp.eq.s32.totalorder %s32, 0
      %p121 = por %p119, %p120
      %p122 = scmp.ne.s32.totalorder %s108, %s109
      %p123 = scmp.eq.s32.totalorder %s33, 1
      %p124 = por %p122, %p123
      %p126 = scmp.ne.s32.totalorder %s109, %s125
      %p127 = scmp.eq.s32.totalorder %s33, 0
      %p128 = por %p126, %p127
      %s129 = ssub.s32 %s34, %s46
      %p130 = scmp.eq.s32.totalorder %s129, 0
      %s132 = sadd.s32 %s131, 1
      %s133 = scalar_select %p130, %s131, %s132
      %p136 = pneg %p130
      %p137 = scmp.eq.s32.totalorder %s27, 1
      %p138 = por %p136, %p137
      %p139 = scmp.ne.s32.totalorder %s131, %s134
      %p140 = scmp.eq.s32.totalorder %s27, 0
      %p141 = por %p139, %p140
      %p142 = scmp.ne.s32.totalorder %s131, %s134
      %p143 = scmp.eq.s32.totalorder %s32, 1
      %p144 = por %p142, %p143
      %p145 = scmp.ne.s32.totalorder %s134, %s135
      %p146 = scmp.eq.s32.totalorder %s32, 0
      %p147 = por %p145, %p146
      %p148 = scmp.ne.s32.totalorder %s134, %s135
      %p149 = scmp.eq.s32.totalorder %s33, 1
      %p150 = por %p148, %p149
      %p152 = scmp.ne.s32.totalorder %s135, %s151
      %p153 = scmp.eq.s32.totalorder %s33, 0
      %p154 = por %p152, %p153
      %s155 = ssub.s32 %s34, %s46
      %p156 = scmp.eq.s32.totalorder %s155, 0
      %s158 = sadd.s32 %s157, 1
      %s159 = scalar_select %p156, %s157, %s158
      %p162 = pneg %p156
      %p163 = scmp.eq.s32.totalorder %s27, 1
      %p164 = por %p162, %p163
      %p165 = scmp.ne.s32.totalorder %s157, %s160
      %p166 = scmp.eq.s32.totalorder %s27, 0
      %p167 = por %p165, %p166
      %p168 = scmp.ne.s32.totalorder %s157, %s160
      %p169 = scmp.eq.s32.totalorder %s32, 1
      %p170 = por %p168, %p169
      %p171 = scmp.ne.s32.totalorder %s160, %s161
      %p172 = scmp.eq.s32.totalorder %s32, 0
      %p173 = por %p171, %p172
      %p174 = scmp.ne.s32.totalorder %s160, %s161
      %p175 = scmp.eq.s32.totalorder %s33, 1
      %p176 = por %p174, %p175
      %p178 = scmp.ne.s32.totalorder %s161, %s177
      %p179 = scmp.eq.s32.totalorder %s33, 0
      %p180 = por %p178, %p179
      %s181 = ssub.s32 %s34, %s46
      %p182 = scmp.eq.s32.totalorder %s181, 0
      %s184 = sadd.s32 %s183, 1
      %s185 = scalar_select %p182, %s183, %s184
      %p188 = pneg %p182
      %p189 = scmp.eq.s32.totalorder %s27, 1
      %p190 = por %p188, %p189
      %p191 = scmp.ne.s32.totalorder %s183, %s186
      %p192 = scmp.eq.s32.totalorder %s27, 0
      %p193 = por %p191, %p192
      %p194 = scmp.ne.s32.totalorder %s183, %s186
      %p195 = scmp.eq.s32.totalorder %s32, 1
      %p196 = por %p194, %p195
      %p197 = scmp.ne.s32.totalorder %s186, %s187
      %p198 = scmp.eq.s32.totalorder %s32, 0
      %p199 = por %p197, %p198
      %p200 = scmp.ne.s32.totalorder %s186, %s187
      %p201 = scmp.eq.s32.totalorder %s33, 1
      %p202 = por %p200, %p201
      %p204 = scmp.ne.s32.totalorder %s187, %s203
      %p205 = scmp.eq.s32.totalorder %s33, 0
      %p206 = por %p204, %p205
      %p207 = scmp.le.s32.totalorder 1, %s27
      %p208 = scmp.lt.s32.totalorder %s27, 3
      %p209 = pnand %p207, %p208
      %p210 = pneg %p209
      // Predicated region
      $region9: #{tpu_custom_call.1} parent=5 // pred_check
        _
      $region10: #{tpu_custom_call.1} parent=5 // pred_check_branch
        %212 = sbr.rel (%p209) target = $region12
      $region11: #{tpu_custom_call.1} parent=5 // pred_region
        %s213 = ssub.s32 %s27, 1
      $region12: #{tpu_custom_call.1} parent=5 // pred_fallthru
        _
      %p214 = scmp.lt.s32.totalorder %s27, 2
      // Predicated region
      $region13: #{tpu_custom_call.1} parent=5 // pred_check
        %p215 = pneg %p214
      $region14: #{tpu_custom_call.1} parent=5 // pred_check_branch
        %217 = sbr.rel (%p215) target = $region16
      $region15: #{tpu_custom_call.1} parent=5 // pred_region
        // Predicated region
        $region17: #{tpu_custom_call.1} parent=15 // pred_check
          %p218 = pneg %p61
        $region18: #{tpu_custom_call.1} parent=15 // pred_check_branch
          %220 = sbr.rel (%p218) target = $region20
        $region19: #{tpu_custom_call.1} parent=15 // pred_region
          %s221 = sand.u32 %s51, 1
          %s222 = scalar_lea.sflag [#allocation3], %s221
          %s223 = sand.u32 %s51, 1
          %s224 = smul.addr %s223, 32
          %s225 = scalar_lea.vmem [#allocation2], %s224
          %s227 = ssub.s32 512, 512
          %228 = vsyncadd %s222, %s227
          %s229 = smul.addr %s34, 4
          %s230 = sadd.s32 %s35, %s229
          %s231 = smul.addr %s230, 128
          %s232 = scalar_lea.hbm %s0, %s231
          %s233 = sshll.u32 %s225, 4
          %s234 = int_to_ptr.vmem [resolvable:$true] %s233
          %239 = dma.hbm_to_vmem [thread:$0]  %s232, 512, %s234, %s222, 128, 128, 8
        $region20: #{tpu_custom_call.1} parent=15 // pred_fallthru
          _
        // Predicated region
        $region21: #{tpu_custom_call.1} parent=15 // pred_check
          %p240 = pneg %p89
        $region22: #{tpu_custom_call.1} parent=15 // pred_check_branch
          %242 = sbr.rel (%p240) target = $region24
        $region23: #{tpu_custom_call.1} parent=15 // pred_region
          %s243 = sand.u32 %s79, 1
          %s244 = scalar_lea.sflag [#allocation6], %s243
          %s245 = sand.u32 %s79, 1
          %s246 = smul.addr %s245, 8
          %s247 = scalar_lea.vmem [#allocation5], %s246
          %s249 = ssub.s32 128, 128
          %250 = vsyncadd %s244, %s249
          %s251 = sadd.s32 %s35, %s34
          %s252 = smul.addr %s251, 128
          %s253 = scalar_lea.hbm %s1, %s252
          %s255 = sshll.u32 %s247, 4
          %s256 = int_to_ptr.vmem [resolvable:$true] %s255
          %258 = dma.hbm_to_vmem [thread:$0]  %s253, 128, %s256, %s244
        $region24: #{tpu_custom_call.1} parent=15 // pred_fallthru
          _
      $region16: #{tpu_custom_call.1} parent=5 // pred_fallthru
        _
      %p259 = scmp.le.s32.totalorder 1, %s27
      %p260 = scmp.lt.s32.totalorder %s27, 3
      %p261 = pnand %p259, %p260
      %p262 = pneg %p261
      // Predicated region
      $region25: #{tpu_custom_call.1} parent=5 // pred_check
        _
      $region26: #{tpu_custom_call.1} parent=5 // pred_check_branch
        %264 = sbr.rel (%p261) target = $region28
      $region27: #{tpu_custom_call.1} parent=5 // pred_region
        %s265 = ssub.s32 %s27, 1
        %s266 = sand.u32 %s54, 1
        %s267 = scalar_lea.sflag [#allocation3], %s266
        %s268 = sand.u32 %s54, 1
        %s269 = smul.addr %s268, 32
        %s270 = scalar_lea.vmem [#allocation2], %s269
        // Predicated region
        $region29: #{tpu_custom_call.1} parent=27 // pred_check
          %p271 = pneg %p67
        $region30: #{tpu_custom_call.1} parent=27 // pred_check_branch
          %273 = sbr.rel (%p271) target = $region32
        $region31: #{tpu_custom_call.1} parent=27 // pred_region
          %274 = dma.done %s267, 512
        $region32: #{tpu_custom_call.1} parent=27 // pred_fallthru
          _
        %s275 = sand.u32 %s82, 1
        %s276 = scalar_lea.sflag [#allocation6], %s275
        %s277 = sand.u32 %s82, 1
        %s278 = smul.addr %s277, 8
        %s279 = scalar_lea.vmem [#allocation5], %s278
        // Predicated region
        $region33: #{tpu_custom_call.1} parent=27 // pred_check
          %p280 = pneg %p95
        $region34: #{tpu_custom_call.1} parent=27 // pred_check_branch
          %282 = sbr.rel (%p280) target = $region36
        $region35: #{tpu_custom_call.1} parent=27 // pred_region
          %283 = dma.done %s276, 128
        $region36: #{tpu_custom_call.1} parent=27 // pred_fallthru
          _
        %s284 = sand.u32 %s54, 1
        %s285 = scalar_lea.sflag [#allocation3], %s284
        %s286 = sand.u32 %s54, 1
        %s287 = smul.addr %s286, 32
        %s288 = scalar_lea.vmem [#allocation2], %s287
        %p289 = pneg %p67
        %p290 = pneg %p64
        %s291 = sand.u32 %s82, 1
        %s292 = scalar_lea.sflag [#allocation6], %s291
        %s293 = sand.u32 %s82, 1
        %s294 = smul.addr %s293, 8
        %s295 = scalar_lea.vmem [#allocation5], %s294
        %p296 = pneg %p95
        %p297 = pneg %p92
        %p298 = pneg %p121
        %p299 = pneg %p118
        %s300 = sand.u32 %s108, 1
        %s301 = scalar_lea.sflag [#allocation4], %s300
        %s302 = sand.u32 %s108, 1
        %s303 = smul.addr %s302, 8
        %s304 = scalar_lea.vmem [#allocation7], %s303
        %p305 = pneg %p147
        %p306 = pneg %p144
        %s307 = sand.u32 %s32, 1
        %s308 = scalar_lea.sflag [#allocation9], %s307
        %s309 = sand.u32 %s134, 1
        %s310 = smul.addr %s309, 32
        %s311 = scalar_lea.vmem [#allocation8], %s310
        %p312 = pneg %p173
        %p313 = pneg %p170
        %s314 = sand.u32 %s32, 1
        %s315 = scalar_lea.sflag [#allocation9], %s314
        %s316 = sand.u32 %s160, 1
        %s317 = smul.addr %s316, 32
        %s318 = scalar_lea.vmem [#allocation10], %s317
        %p319 = pneg %p199
        %p320 = pneg %p196
        %s321 = sand.u32 %s186, 1
        %s322 = scalar_lea.sflag [#allocation12], %s321
        %s323 = sand.u32 %s186, 1
        %s324 = smul.addr %s323, 32
        %s325 = scalar_lea.vmem [#allocation11], %s324
        %p326 = scmp.eq.s32.totalorder %s37, 0
        // Predicated region
        $region37: #{tpu_custom_call.1} parent=27 // pred_check
          %p327 = pneg %p326
        $region38: #{tpu_custom_call.1} parent=27 // pred_check_branch
          %329 = sbr.rel (%p327) target = $region40
        $region39: #{tpu_custom_call.1} parent=27 // pred_region
          %330 = vst [vmem:[%s304] sm:$0xff] 0.0
          %331 = vst [vmem:[%s311] sm:$0xff] 0.0
          %332 = vst [vmem:[%s311 + $0x8] sm:$0xff] 0.0
          %333 = vst [vmem:[%s311 + $0x10] sm:$0xff] 0.0
          %334 = vst [vmem:[%s311 + $0x18] sm:$0xff] 0.0
          %335 = vst [vmem:[%s318] sm:$0xff] 0.0
          %336 = vst [vmem:[%s318 + $0x8] sm:$0xff] 0.0
          %337 = vst [vmem:[%s318 + $0x10] sm:$0xff] 0.0
          %338 = vst [vmem:[%s318 + $0x18] sm:$0xff] 0.0
          %339 = vst [vmem:[%s325] sm:$0xff] 0.0
          %340 = vst [vmem:[%s325 + $0x8] sm:$0xff] 0.0
          %341 = vst [vmem:[%s325 + $0x10] sm:$0xff] 0.0
          %342 = vst [vmem:[%s325 + $0x18] sm:$0xff] 0.0
        $region40: #{tpu_custom_call.1} parent=27 // pred_fallthru
          _
        %v343 = vld [vmem:[%s279] sm:$0xff]
        %v344 = vlaneseq
        %v345 = vshrl.u32 %v344, 7
        %v346 = vlaneseq
        %v347 = vand.u32 %v346, 127
        %s348 = smul.u32 %s37, 8
        %v349 = vstv %s348
        %v350 = vadd.s32 %v349, %v345
        %v351 = vmul.u32 %v350, 128
        %v352 = vadd.s32 %v351, %v347
        %vm353 = vcmp.lt.s32.totalorder %v352, 256
        %v354 = vld [vmem:[%s270] sm:$0xff]
        %v355 = vsel %vm353, %v354, 0.0
        %s356 = scalar_lea.vmem %s270, 8 [#allocation2]
        %v357 = vld [vmem:[%s356] sm:$0xff]
        %v358 = vsel %vm353, %v357, 0.0
        %s359 = scalar_lea.vmem %s270, 16 [#allocation2]
        %v360 = vld [vmem:[%s359] sm:$0xff]
        %v361 = vsel %vm353, %v360, 0.0
        %s362 = scalar_lea.vmem %s270, 24 [#allocation2]
        %v363 = vld [vmem:[%s362] sm:$0xff]
        %v364 = vsel %vm353, %v363, 0.0
        %v365 = vmax.f32 %v355, %v358
        %v366 = vmax.f32 %v365, %v361
        %v367 = vmax.f32 %v366, %v364
        %v368 = vsub.f32 %v355, %v367
        %v369 = vmul.f32 %v368, 1.442695
        %v370 = vpow.pop %v369
        %v371 = vsub.f32 %v358, %v367
        %v372 = vmul.f32 %v371, 1.442695
        %v373 = vpow.pop %v372
        %v374 = vsub.f32 %v361, %v367
        %v375 = vmul.f32 %v374, 1.442695
        %v376 = vpow.pop %v375
        %v377 = vsub.f32 %v364, %v367
        %v378 = vmul.f32 %v377, 1.442695
        %v379 = vpow.pop %v378
        %v380 = vadd.f32 %v370, %v373
        %v381 = vadd.f32 %v380, %v376
        %v382 = vadd.f32 %v381, %v379
        %v383 = vlog2.pop %v382
        %v384 = vmul.f32 %v383, 0.6931472
        %v385 = vadd.f32 %v384, %v367
        %v386 = vrcp.pop %v382
        %v387 = vmul.f32 %v382, %v386
        %v388 = vsub.f32 2.0, %v387
        %v389 = vmul.f32 %v386, %v388
        %v390 = vsel %vm353, %v389, 0.0
        %vm391 = vcmp.eq.s32.totalorder %v343, 0
        %vm392 = vmand %vm391, %vm353
        %v393 = vsel %vm392, %v355, 0.0
        %v394 = vadd.f32 %v393, 0.0
        %v395 = vmul.f32 %v370, %v390
        %v396 = vld [vmem:[%s311] sm:$0xff]
        %v397 = vsel %vm392, %v395, 0.0
        %v398 = vadd.f32 %v397, 0.0
        %v399 = vadd.f32 %v396, %v398
        %400 = vst [vmem:[%s311] sm:$0xff] %v399
        %v401 = vld [vmem:[%s318] sm:$0xff]
        %v402 = vadd.f32 %v395, 0.0
        %v403 = vadd.f32 %v401, %v402
        %404 = vst [vmem:[%s318] sm:$0xff] %v403
        %v405 = vld [vmem:[%s325] sm:$0xff]
        %v406 = vsel %vm392, 1, 0
        %v407 = vcvt.s32.f32 %v406
        %v408 = vadd.f32 %v407, 0.0
        %v409 = vadd.f32 %v405, %v408
        %410 = vst [vmem:[%s325] sm:$0xff] %v409
        %vm411 = vcmp.eq.s32.totalorder %v343, 1
        %vm412 = vmand %vm411, %vm353
        %v413 = vsel %vm412, %v358, 0.0
        %v414 = vadd.f32 %v394, %v413
        %v415 = vmul.f32 %v373, %v390
        %s416 = scalar_lea.vmem %s311, 8 [#allocation8]
        %v417 = vld [vmem:[%s416] sm:$0xff]
        %v418 = vsel %vm412, %v415, 0.0
        %v419 = vadd.f32 %v418, 0.0
        %v420 = vadd.f32 %v417, %v419
        %421 = vst [vmem:[%s416] sm:$0xff] %v420
        %s422 = scalar_lea.vmem %s318, 8 [#allocation10]
        %v423 = vld [vmem:[%s422] sm:$0xff]
        %v424 = vadd.f32 %v415, 0.0
        %v425 = vadd.f32 %v423, %v424
        %426 = vst [vmem:[%s422] sm:$0xff] %v425
        %s427 = scalar_lea.vmem %s325, 8 [#allocation11]
        %v428 = vld [vmem:[%s427] sm:$0xff]
        %v429 = vsel %vm412, 1, 0
        %v430 = vcvt.s32.f32 %v429
        %v431 = vadd.f32 %v430, 0.0
        %v432 = vadd.f32 %v428, %v431
        %433 = vst [vmem:[%s427] sm:$0xff] %v432
        %vm434 = vcmp.eq.s32.totalorder %v343, 2
        %vm435 = vmand %vm434, %vm353
        %v436 = vsel %vm435, %v361, 0.0
        %v437 = vadd.f32 %v414, %v436
        %v438 = vmul.f32 %v376, %v390
        %s439 = scalar_lea.vmem %s311, 16 [#allocation8]
        %v440 = vld [vmem:[%s439] sm:$0xff]
        %v441 = vsel %vm435, %v438, 0.0
        %v442 = vadd.f32 %v441, 0.0
        %v443 = vadd.f32 %v440, %v442
        %444 = vst [vmem:[%s439] sm:$0xff] %v443
        %s445 = scalar_lea.vmem %s318, 16 [#allocation10]
        %v446 = vld [vmem:[%s445] sm:$0xff]
        %v447 = vadd.f32 %v438, 0.0
        %v448 = vadd.f32 %v446, %v447
        %449 = vst [vmem:[%s445] sm:$0xff] %v448
        %s450 = scalar_lea.vmem %s325, 16 [#allocation11]
        %v451 = vld [vmem:[%s450] sm:$0xff]
        %v452 = vsel %vm435, 1, 0
        %v453 = vcvt.s32.f32 %v452
        %v454 = vadd.f32 %v453, 0.0
        %v455 = vadd.f32 %v451, %v454
        %456 = vst [vmem:[%s450] sm:$0xff] %v455
        %vm457 = vcmp.eq.s32.totalorder %v343, 3
        %vm458 = vmand %vm457, %vm353
        %v459 = vsel %vm458, %v364, 0.0
        %v460 = vadd.f32 %v437, %v459
        %v461 = vmul.f32 %v379, %v390
        %s462 = scalar_lea.vmem %s311, 24 [#allocation8]
        %v463 = vld [vmem:[%s462] sm:$0xff]
        %v464 = vsel %vm458, %v461, 0.0
        %v465 = vadd.f32 %v464, 0.0
        %v466 = vadd.f32 %v463, %v465
        %467 = vst [vmem:[%s462] sm:$0xff] %v466
        %s468 = scalar_lea.vmem %s318, 24 [#allocation10]
        %v469 = vld [vmem:[%s468] sm:$0xff]
        %v470 = vadd.f32 %v461, 0.0
        %v471 = vadd.f32 %v469, %v470
        %472 = vst [vmem:[%s468] sm:$0xff] %v471
        %s473 = scalar_lea.vmem %s325, 24 [#allocation11]
        %v474 = vld [vmem:[%s473] sm:$0xff]
        %v475 = vsel %vm458, 1, 0
        %v476 = vcvt.s32.f32 %v475
        %v477 = vadd.f32 %v476, 0.0
        %v478 = vadd.f32 %v474, %v477
        %479 = vst [vmem:[%s473] sm:$0xff] %v478
        %v480 = vsub.f32 %v385, %v460
        %v481 = vsel %vm353, %v480, 0.0
        %v482 = vld [vmem:[%s304] sm:$0xff]
        %v483 = vadd.f32 %v481, 0.0
        %v484 = vadd.f32 %v482, %v483
        %485 = vst [vmem:[%s304] sm:$0xff] %v484
        %s486 = sand.u32 %s108, 1
        %s487 = scalar_lea.sflag [#allocation4], %s486
        %s488 = sand.u32 %s108, 1
        %s489 = smul.addr %s488, 8
        %s490 = scalar_lea.vmem [#allocation7], %s489
        %s491 = sand.u32 %s32, 1
        %s492 = scalar_lea.sflag [#allocation9], %s491
        %s493 = sand.u32 %s134, 1
        %s494 = smul.addr %s493, 32
        %s495 = scalar_lea.vmem [#allocation8], %s494
        %s496 = sand.u32 %s32, 1
        %s497 = scalar_lea.sflag [#allocation9], %s496
        %s498 = sand.u32 %s160, 1
        %s499 = smul.addr %s498, 32
        %s500 = scalar_lea.vmem [#allocation10], %s499
        %s501 = sand.u32 %s186, 1
        %s502 = scalar_lea.sflag [#allocation12], %s501
        %s503 = sand.u32 %s186, 1
        %s504 = smul.addr %s503, 32
        %s505 = scalar_lea.vmem [#allocation11], %s504
        // Predicated region
        $region41: #{tpu_custom_call.1} parent=27 // pred_check
          %p506 = pneg %p118
        $region42: #{tpu_custom_call.1} parent=27 // pred_check_branch
          %508 = sbr.rel (%p506) target = $region44
        $region43: #{tpu_custom_call.1} parent=27 // pred_region
          %s510 = ssub.s32 128, 128
          %511 = vsyncadd %s487, %s510
          %s512 = smul.addr %s36, 128
          %s513 = scalar_lea.hbm %s2, %s512
          %s515 = sshll.u32 %s490, 4
          %s516 = int_to_ptr.vmem [resolvable:$true] %s515
          %518 = dma.vmem_to_hbm [thread:$0]  %s516, 128, %s513, %s487
        $region44: #{tpu_custom_call.1} parent=27 // pred_fallthru
          _
        // Predicated region
        $region45: #{tpu_custom_call.1} parent=27 // pred_check
          %p519 = pneg %p144
        $region46: #{tpu_custom_call.1} parent=27 // pred_check_branch
          %521 = sbr.rel (%p519) target = $region48
        $region47: #{tpu_custom_call.1} parent=27 // pred_region
          %s523 = ssub.s32 512, 512
          %524 = vsyncadd %s492, %s523
          %s525 = smul.addr %s36, 4
          %s526 = smul.addr %s525, 128
          %s527 = scalar_lea.hbm %s3, %s526
          %s528 = sshll.u32 %s495, 4
          %s529 = int_to_ptr.vmem [resolvable:$true] %s528
          %534 = dma.vmem_to_hbm [thread:$0]  %s529, 512, %s527, %s492, 128, 128, 8
        $region48: #{tpu_custom_call.1} parent=27 // pred_fallthru
          _
        // Predicated region
        $region49: #{tpu_custom_call.1} parent=27 // pred_check
          %p535 = pneg %p170
        $region50: #{tpu_custom_call.1} parent=27 // pred_check_branch
          %537 = sbr.rel (%p535) target = $region52
        $region51: #{tpu_custom_call.1} parent=27 // pred_region
          %s539 = ssub.s32 512, 512
          %540 = vsyncadd %s497, %s539
          %s541 = smul.addr %s36, 4
          %s542 = smul.addr %s541, 128
          %s543 = scalar_lea.hbm %s4, %s542
          %s544 = sshll.u32 %s500, 4
          %s545 = int_to_ptr.vmem [resolvable:$true] %s544
          %550 = dma.vmem_to_hbm [thread:$0]  %s545, 512, %s543, %s497, 128, 128, 8
        $region52: #{tpu_custom_call.1} parent=27 // pred_fallthru
          _
        // Predicated region
        $region53: #{tpu_custom_call.1} parent=27 // pred_check
          %p551 = pneg %p196
        $region54: #{tpu_custom_call.1} parent=27 // pred_check_branch
          %553 = sbr.rel (%p551) target = $region56
        $region55: #{tpu_custom_call.1} parent=27 // pred_region
          %s555 = ssub.s32 512, 512
          %556 = vsyncadd %s502, %s555
          %s557 = smul.addr %s36, 4
          %s558 = smul.addr %s557, 128
          %s559 = scalar_lea.hbm %s5, %s558
          %s560 = sshll.u32 %s505, 4
          %s561 = int_to_ptr.vmem [resolvable:$true] %s560
          %566 = dma.vmem_to_hbm [thread:$0]  %s561, 512, %s559, %s502, 128, 128, 8
        $region56: #{tpu_custom_call.1} parent=27 // pred_fallthru
          _
      $region28: #{tpu_custom_call.1} parent=5 // pred_fallthru
        _
      %p567 = scmp.le.s32.totalorder 2, %s27
      // Predicated region
      $region57: #{tpu_custom_call.1} parent=5 // pred_check
        %p568 = pneg %p567
      $region58: #{tpu_custom_call.1} parent=5 // pred_check_branch
        %570 = sbr.rel (%p568) target = $region60
      $region59: #{tpu_custom_call.1} parent=5 // pred_region
        %s571 = ssub.s32 %s27, 2
        // Predicated region
        $region61: #{tpu_custom_call.1} parent=59 // pred_check
          %p572 = pneg %p124
        $region62: #{tpu_custom_call.1} parent=59 // pred_check_branch
          %574 = sbr.rel (%p572) target = $region64
        $region63: #{tpu_custom_call.1} parent=59 // pred_region
          %s575 = sand.u32 %s109, 1
          %s576 = scalar_lea.sflag [#allocation4], %s575
          %s577 = sand.u32 %s109, 1
          %s578 = smul.addr %s577, 8
          %s579 = scalar_lea.vmem [#allocation7], %s578
          %580 = dma.done %s576, 128
        $region64: #{tpu_custom_call.1} parent=59 // pred_fallthru
          _
        // Predicated region
        $region65: #{tpu_custom_call.1} parent=59 // pred_check
          %p581 = pneg %p150
        $region66: #{tpu_custom_call.1} parent=59 // pred_check_branch
          %583 = sbr.rel (%p581) target = $region68
        $region67: #{tpu_custom_call.1} parent=59 // pred_region
          %s584 = sand.u32 %s33, 1
          %s585 = scalar_lea.sflag [#allocation9], %s584
          %s586 = sand.u32 %s135, 1
          %s587 = smul.addr %s586, 32
          %s588 = scalar_lea.vmem [#allocation8], %s587
          %589 = dma.done %s585, 512
        $region68: #{tpu_custom_call.1} parent=59 // pred_fallthru
          _
        // Predicated region
        $region69: #{tpu_custom_call.1} parent=59 // pred_check
          %p590 = pneg %p176
        $region70: #{tpu_custom_call.1} parent=59 // pred_check_branch
          %592 = sbr.rel (%p590) target = $region72
        $region71: #{tpu_custom_call.1} parent=59 // pred_region
          %s593 = sand.u32 %s33, 1
          %s594 = scalar_lea.sflag [#allocation9], %s593
          %s595 = sand.u32 %s161, 1
          %s596 = smul.addr %s595, 32
          %s597 = scalar_lea.vmem [#allocation10], %s596
          %598 = dma.done %s594, 512
        $region72: #{tpu_custom_call.1} parent=59 // pred_fallthru
          _
        // Predicated region
        $region73: #{tpu_custom_call.1} parent=59 // pred_check
          %p599 = pneg %p202
        $region74: #{tpu_custom_call.1} parent=59 // pred_check_branch
          %601 = sbr.rel (%p599) target = $region76
        $region75: #{tpu_custom_call.1} parent=59 // pred_region
          %s602 = sand.u32 %s187, 1
          %s603 = scalar_lea.sflag [#allocation12], %s602
          %s604 = sand.u32 %s187, 1
          %s605 = smul.addr %s604, 32
          %s606 = scalar_lea.vmem [#allocation11], %s605
          %607 = dma.done %s603, 512
        $region76: #{tpu_custom_call.1} parent=59 // pred_fallthru
          _
      $region60: #{tpu_custom_call.1} parent=5 // pred_fallthru
        _
    $region6: #{tpu_custom_call.1} parent=1 // loop_footer
      %s31 = sadd.s32 1, %s27
    $region7: #{tpu_custom_call.1} parent=1 // loop_footer_branch
      %26 = sbr.rel target = $region3
    $region8: #{tpu_custom_call.1} parent=1 // loop_exit
      _
    %608 = vsyncpa [#allocation3], 1
    %s609 = scalar_lea.sflag [#allocation3], 1
    %610 = vsyncpa %s609, 1
    %611 = vsyncpa [#allocation6], 1
    %s612 = scalar_lea.sflag [#allocation6], 1
    %613 = vsyncpa %s612, 1
    %614 = vsyncpa [#allocation4], 1
    %s615 = scalar_lea.sflag [#allocation4], 1
    %616 = vsyncpa %s615, 1
    %617 = vsyncpa [#allocation9], 1
    %s618 = scalar_lea.sflag [#allocation9], 1
    %619 = vsyncpa %s618, 1
    %620 = vsyncpa [#allocation12], 1
    %s621 = scalar_lea.sflag [#allocation12], 1
    %622 = vsyncpa %s621, 1

</llo_original>
